<compile_context>
chip_gen: v6e
topology: v6e:2x2x1
jax: 0.10.0
libtpu: 0.0.40
codegen_flags: <defaults>
</compile_context>

<pallas_src>
import math

import jax
import jax.numpy as jnp
from jax.experimental import pallas as pl
from jax.experimental.pallas import tpu as pltpu

_LANE = 128
_SUBLANE = 8


def _round_up(x, m):
    return (x + m - 1) // m * m


# --------------------------------------------------------------------------
# One-time parameter preparation (hoisted out of the forward pass).
# --------------------------------------------------------------------------
def prepare_params(weights, biases, *, mxu_dtype=jnp.bfloat16):
    """Pad / cast / pack parameters once.

    weights: list of (d_i, d_{i+1}) float32  (already (in, out); transposed
             from PyTorch nn.Linear's (out, in) layout)
    biases:  list of (d_{i+1},) float32
    """
    num_layers = len(weights)
    assert num_layers >= 1 and len(biases) == num_layers
    dims = [weights[0].shape[0]] + [w.shape[1] for w in weights]
    for i, (w, b) in enumerate(zip(weights, biases)):
        assert w.shape == (dims[i], dims[i + 1])
        assert b.shape == (dims[i + 1],)

    # Hidden feature dims padded to 128 lanes (lane-dense intermediates);
    # input dim d0 and final output dim stay at logical width.
    d_in_pads = [dims[0]] + [_round_up(d, _LANE) for d in dims[1:-1]]
    d_out_pads = [_round_up(d, _LANE) for d in dims[1:-1]] + [dims[-1]]
    d_bias = max(_round_up(d, _LANE) for d in dims[1:])

    w_pad = []
    for i, w in enumerate(weights):
        wp = jnp.zeros((d_in_pads[i], d_out_pads[i]), jnp.float32)
        wp = wp.at[:dims[i], :dims[i + 1]].set(w)
        w_pad.append(wp.astype(mxu_dtype))          # bf16 MXU operands

    # All biases packed into one (L, 1, Dbias) f32 buffer (zero padding).
    b_packed = jnp.zeros((num_layers, 1, d_bias), jnp.float32)
    for i, b in enumerate(biases):
        b_packed = b_packed.at[i, 0, :dims[i + 1]].set(b)

    return {
        "weights": tuple(w_pad),
        "biases": b_packed,
        "dims": tuple(dims),
        "d_in_pads": tuple(d_in_pads),
        "d_out_pads": tuple(d_out_pads),
        "d_bias": d_bias,
        "mxu_dtype": mxu_dtype,
    }


# --------------------------------------------------------------------------
# Fused kernel
# --------------------------------------------------------------------------
def _make_kernel(num_layers, d_out_pads, d_bias, mxu_dtype):
    """Fused MLP over one batch tile.

    Ref order: (x_ref, bias_ref, w_0, ..., w_{L-1}, out_ref)
      x_ref    : (tile_n, d0)                 f32
      bias_ref : (num_layers, 1, d_bias)      f32 (packed, zero-padded)
      w_i      : (d_in_pad_i, d_out_pad_i)    mxu_dtype (bf16)
      out_ref  : (tile_n, d_last)             f32 (logical width)
    """

    def kernel(x_ref, bias_ref, *refs):
        out_ref = refs[-1]
        w_refs = refs[:num_layers]

        # Cast once; activations travel in bf16 between layers, matmuls
        # accumulate in f32, elementwise bias/ReLU/sigmoid math stays f32.
        x = x_ref[...].astype(mxu_dtype)
        for i in range(num_layers):
            w = w_refs[i][...]                       # (d_in_pad, d_out_pad)
            b = bias_ref[i]                          # (1, d_bias) f32
            if d_out_pads[i] != d_bias:
                b = b[:, :d_out_pads[i]]
            y = jnp.dot(x, w, preferred_element_type=jnp.float32) + b
            if i < num_layers - 1:
                # ReLU in f32 (v5e-safe), single cast feeds the next MXU op.
                x = jnp.maximum(y, 0.0).astype(mxu_dtype)
            else:
                # Sigmoid: EUP exp + approx EUP reciprocal (VALU stays free).
                out_ref[...] = pl.reciprocal(
                    1.0 + jnp.exp(-y), approx=True).astype(out_ref.dtype)

    return kernel


# --------------------------------------------------------------------------
# Forward pass (no per-call parameter manipulation)
# --------------------------------------------------------------------------
def generative_model_forward(x, params, *, tile_n=None, interpret=False):
    """Forward pass of GenerativeModel with a single fused pallas_call.

    x:      (N, d0) float32
    params: output of prepare_params()
    """
    dims = params["dims"]
    d_in_pads = params["d_in_pads"]
    d_out_pads = params["d_out_pads"]
    d_bias = params["d_bias"]
    mxu_dtype = params["mxu_dtype"]
    num_layers = len(params["weights"])

    n, d0 = x.shape
    assert d0 == dims[0]

    # ---- batch tiling --------------------------------------------------
    # Small batches: single grid step (v5e/v6e single-TC -> extra steps are
    # pure overhead).  Larger batches: tiles up to 1024 rows but always >=2
    # grid steps so v7x's two TensorCores both get work.
    if tile_n is None:
        if n <= 256:
            tile_n = max(_SUBLANE, _round_up(n, _SUBLANE))
        else:
            tile_n = min(1024, _round_up(-(-n // 2), _SUBLANE))
    assert tile_n % _SUBLANE == 0
    n_pad = _round_up(n, tile_n)

    if n_pad != n:
        x_in = jnp.zeros((n_pad, d0), x.dtype).at[:n].set(x)
    else:
        x_in = x

    grid = (n_pad // tile_n,)
    kernel = _make_kernel(num_layers, d_out_pads, d_bias, mxu_dtype)

    in_specs = [
        pl.BlockSpec((tile_n, d0), lambda i: (i, 0)),                   # x
        pl.BlockSpec((num_layers, 1, d_bias), lambda i: (0, 0, 0)),     # biases
    ]
    for li in range(num_layers):
        # Constant index_map -> weight DMA'd once, resident across grid steps.
        in_specs.append(
            pl.BlockSpec((d_in_pads[li], d_out_pads[li]), lambda i: (0, 0)))

    out_spec = pl.BlockSpec((tile_n, dims[-1]), lambda i: (i, 0))

    # ---- VMEM budget (models true (8,128) tile footprints, double-buffered)
    w_itemsize = jnp.dtype(mxu_dtype).itemsize
    w_bytes = sum(_round_up(d_in_pads[i], 16)
                  * _round_up(d_out_pads[i], _LANE) * w_itemsize
                  for i in range(num_layers))
    x_bytes = tile_n * _round_up(d0, _LANE) * 4
    o_bytes = tile_n * _round_up(dims[-1], _LANE) * 4
    b_bytes = num_layers * _SUBLANE * d_bias * 4
    vmem_bytes = 2 * (x_bytes + o_bytes + w_bytes + b_bytes)
    vmem_limit = int(min(max(2 * vmem_bytes, 16 << 20), 48 << 20))

    # ---- advisory cost estimate for the XLA scheduler --------------------
    cost = pl.CostEstimate(
        flops=2 * n_pad * sum(d_in_pads[i] * d_out_pads[i]
                              for i in range(num_layers)),
        transcendentals=n_pad * dims[-1],
        bytes_accessed=(n_pad * d0 * 4 + n_pad * dims[-1] * 4
                        + w_bytes + num_layers * d_bias * 4),
    )

    out = pl.pallas_call(
        kernel,
        out_shape=jax.ShapeDtypeStruct((n_pad, dims[-1]), x.dtype),
        grid_spec=pltpu.PrefetchScalarGridSpec(
            num_scalar_prefetch=0,
            grid=grid,
            in_specs=in_specs,
            out_specs=out_spec,
        ),
        compiler_params=pltpu.CompilerParams(
            dimension_semantics=("parallel",),
            vmem_limit_bytes=vmem_limit),
        cost_estimate=cost,
        interpret=interpret,
    )(x_in, params["biases"], *params["weights"])

    return out if n_pad == n else out[:n]


# --------------------------------------------------------------------------
# Reference & init helpers
# --------------------------------------------------------------------------
def generative_model_reference(x, weights, biases, *, mxu_dtype=jnp.bfloat16):
    """Pure-JAX reference mirroring the PyTorch forward (same MXU dtype).

    NOTE: matmuls run in bf16 to match the kernel's MXU precision, so this
    checks kernel-vs-bf16-baseline, not kernel-vs-f32-PyTorch exactly.
    """
    num_layers = len(weights)
    h = x.astype(jnp.float32)
    for i, (w, b) in enumerate(zip(weights, biases)):
        y = jnp.dot(h.astype(mxu_dtype), w.astype(mxu_dtype),
                    preferred_element_type=jnp.float32) + b
        if i < num_layers - 1:
            h = jnp.maximum(y, 0.0)
        else:
            h = 1.0 / (1.0 + jnp.exp(-y))
    return h


def init_params(key, dims):
    """PyTorch-style nn.Linear init, stored directly in (in, out) layout."""
    weights, biases = [], []
    for i in range(1, len(dims)):
        key, kw, kb = jax.random.split(key, 3)
        bound = 1.0 / math.sqrt(dims[i - 1])
        w = jax.random.uniform(kw, (dims[i - 1], dims[i]), jnp.float32,
                               -bound, bound)
        b = jax.random.uniform(kb, (dims[i],), jnp.float32, -bound, bound)
        weights.append(w)
        biases.append(b)
    return weights, biases


if __name__ == "__main__":
    key = jax.random.PRNGKey(0)

    # GenerativeModel(generative_model_dim=[32, 64, 32, 16])
    dims = [32, 64, 32, 16]
    kx, kp = jax.random.split(key)

    batch = 512
    x = jax.random.normal(kx, (batch, dims[0]), jnp.float32)
    weights, biases = init_params(kp, dims)

    # One-time parameter prep (padding / bf16 cast / bias packing hoisted
    # out of the per-call forward).
    params = prepare_params(weights, biases)

    out = jax.block_until_ready(generative_model_forward(x, params))
    ref = generative_model_reference(x, weights, biases)
    assert out.shape == (batch, dims[-1])
    # Sigmoid range (approx reciprocal can overshoot by ~2^-12 relative).
    assert bool(jnp.all(out >= -1e-3) & jnp.all(out <= 1.0 + 1e-3))
    assert jnp.allclose(out, ref, atol=2e-3, rtol=2e-3), \
        float(jnp.max(jnp.abs(out - ref)))

    # Small, odd batch exercises the row-padding + row-slice path.
    x_small = jax.random.normal(jax.random.PRNGKey(1), (7, dims[0]), jnp.float32)
    out_s = jax.block_until_ready(generative_model_forward(x_small, params))
    ref_s = generative_model_reference(x_small, weights, biases)
    assert out_s.shape == (7, dims[-1])
    assert jnp.allclose(out_s, ref_s, atol=2e-3, rtol=2e-3)

    print("KERNEL_OK")
</pallas_src>

<mosaic_0001>
module attributes {stable_mosaic.version = 11 : i64} {
  func.func @kernel(%arg0: i32, %arg1: memref<256x32xf32, #tpu.memory_space<vmem>>, %arg2: memref<3x1x128xf32, #tpu.memory_space<vmem>>, %arg3: memref<32x128xbf16, #tpu.memory_space<vmem>>, %arg4: memref<128x128xbf16, #tpu.memory_space<vmem>>, %arg5: memref<128x16xbf16, #tpu.memory_space<vmem>>, %arg6: memref<256x16xf32, #tpu.memory_space<vmem>>) attributes {dimension_semantics = [#tpu.dimension_semantics<parallel>], iteration_bounds = array<i64: 2>, scalar_prefetch = 0 : i64, scratch_operands = 0 : i64, tpu.core_type = #tpu.core_type<tc>, window_params = [{transform_indices = @transform_0, window_bounds = array<i64: 256, 32>}, {pipeline_mode = #tpu.pipeline_mode<synchronous>, transform_indices = @transform_1, window_bounds = array<i64: 3, 1, 128>}, {pipeline_mode = #tpu.pipeline_mode<synchronous>, transform_indices = @transform_2, window_bounds = array<i64: 32, 128>}, {pipeline_mode = #tpu.pipeline_mode<synchronous>, transform_indices = @transform_3, window_bounds = array<i64: 128, 128>}, {pipeline_mode = #tpu.pipeline_mode<synchronous>, transform_indices = @transform_4, window_bounds = array<i64: 128, 16>}, {transform_indices = @transform_5, window_bounds = array<i64: 256, 16>}]} {
    %c0 = arith.constant 0 : index
    %c0_0 = arith.constant 0 : index
    %0 = vector.load %arg1[%c0, %c0_0] : memref<256x32xf32, #tpu.memory_space<vmem>>, vector<256x32xf32>
    %1 = arith.truncf %0 : vector<256x32xf32> to vector<256x32xbf16>
    %c0_1 = arith.constant 0 : index
    %c0_2 = arith.constant 0 : index
    %2 = vector.load %arg3[%c0_1, %c0_2] : memref<32x128xbf16, #tpu.memory_space<vmem>>, vector<32x128xbf16>
    %c0_3 = arith.constant 0 : index
    %c0_4 = arith.constant 0 : index
    %c0_5 = arith.constant 0 : index
    %3 = vector.load %arg2[%c0_3, %c0_4, %c0_5] : memref<3x1x128xf32, #tpu.memory_space<vmem>>, vector<1x1x128xf32>
    %4 = vector.shape_cast %3 : vector<1x1x128xf32> to vector<1x128xf32>
    %cst = arith.constant dense<0.000000e+00> : vector<256x128xf32>
    %5 = tpu.matmul %1, %2, %cst {dimension_numbers = #tpu.dot_dimension_numbers<[1], [0], [0], [1], [0, 0, 1, 1], [], []>} : vector<256x32xbf16>, vector<32x128xbf16>, vector<256x128xf32> -> vector<256x128xf32>
    %6 = vector.broadcast %4 : vector<1x128xf32> to vector<256x128xf32>
    %7 = arith.addf %5, %6 : vector<256x128xf32>
    %cst_6 = arith.constant 0.000000e+00 : f32
    %8 = vector.broadcast %cst_6 : f32 to vector<256x128xf32>
    %9 = arith.maximumf %7, %8 : vector<256x128xf32>
    %10 = arith.truncf %9 : vector<256x128xf32> to vector<256x128xbf16>
    %c0_7 = arith.constant 0 : index
    %c0_8 = arith.constant 0 : index
    %11 = vector.load %arg4[%c0_7, %c0_8] : memref<128x128xbf16, #tpu.memory_space<vmem>>, vector<128x128xbf16>
    %c1 = arith.constant 1 : index
    %c0_9 = arith.constant 0 : index
    %c0_10 = arith.constant 0 : index
    %12 = vector.load %arg2[%c1, %c0_9, %c0_10] : memref<3x1x128xf32, #tpu.memory_space<vmem>>, vector<1x1x128xf32>
    %13 = vector.shape_cast %12 : vector<1x1x128xf32> to vector<1x128xf32>
    %cst_11 = arith.constant dense<0.000000e+00> : vector<256x128xf32>
    %14 = tpu.matmul %10, %11, %cst_11 {dimension_numbers = #tpu.dot_dimension_numbers<[1], [0], [0], [1], [0, 0, 1, 1], [], []>} : vector<256x128xbf16>, vector<128x128xbf16>, vector<256x128xf32> -> vector<256x128xf32>
    %15 = vector.broadcast %13 : vector<1x128xf32> to vector<256x128xf32>
    %16 = arith.addf %14, %15 : vector<256x128xf32>
    %cst_12 = arith.constant 0.000000e+00 : f32
    %17 = vector.broadcast %cst_12 : f32 to vector<256x128xf32>
    %18 = arith.maximumf %16, %17 : vector<256x128xf32>
    %19 = arith.truncf %18 : vector<256x128xf32> to vector<256x128xbf16>
    %c0_13 = arith.constant 0 : index
    %c0_14 = arith.constant 0 : index
    %20 = vector.load %arg5[%c0_13, %c0_14] : memref<128x16xbf16, #tpu.memory_space<vmem>>, vector<128x16xbf16>
    %c2 = arith.constant 2 : index
    %c0_15 = arith.constant 0 : index
    %c0_16 = arith.constant 0 : index
    %21 = vector.load %arg2[%c2, %c0_15, %c0_16] : memref<3x1x128xf32, #tpu.memory_space<vmem>>, vector<1x1x128xf32>
    %22 = vector.shape_cast %21 : vector<1x1x128xf32> to vector<1x128xf32>
    %23 = vector.extract_strided_slice %22 {offsets = [0, 0], sizes = [1, 16], strides = [1, 1]} : vector<1x128xf32> to vector<1x16xf32>
    %cst_17 = arith.constant dense<0.000000e+00> : vector<256x16xf32>
    %24 = tpu.matmul %19, %20, %cst_17 {dimension_numbers = #tpu.dot_dimension_numbers<[1], [0], [0], [1], [0, 0, 1, 1], [], []>} : vector<256x128xbf16>, vector<128x16xbf16>, vector<256x16xf32> -> vector<256x16xf32>
    %25 = vector.broadcast %23 : vector<1x16xf32> to vector<256x16xf32>
    %26 = arith.addf %24, %25 : vector<256x16xf32>
    %cst_18 = arith.constant 0.000000e+00 : f32
    %27 = vector.broadcast %cst_18 : f32 to vector<256x16xf32>
    %28 = arith.subf %27, %26 : vector<256x16xf32>
    %29 = math.exp %28 : vector<256x16xf32>
    %cst_19 = arith.constant 1.000000e+00 : f32
    %30 = vector.broadcast %cst_19 : f32 to vector<256x16xf32>
    %31 = arith.addf %30, %29 : vector<256x16xf32>
    %32 = tpu.reciprocal %31 {approx = true} : vector<256x16xf32> -> vector<256x16xf32>
    %c0_20 = arith.constant 0 : index
    %c0_21 = arith.constant 0 : index
    %33 = vector.load %arg6[%c0_20, %c0_21] : memref<256x16xf32, #tpu.memory_space<vmem>>, vector<256x16xf32>
    tpu.vector_store %arg6[%c0_20, %c0_21], %32 {strides = array<i32>} : memref<256x16xf32, #tpu.memory_space<vmem>>, vector<256x16xf32>,
    return
  }
  func.func @transform_0(%arg0: i32) -> (i32, i32) {
    %c0_i32 = arith.constant 0 : i32
    %c0_i32_0 = arith.constant 0 : i32
    return %arg0, %c0_i32 : i32, i32
  }
  func.func @transform_1(%arg0: i32) -> (i32, i32, i32) {
    %c0_i32 = arith.constant 0 : i32
    %c0_i32_0 = arith.constant 0 : i32
    %c0_i32_1 = arith.constant 0 : i32
    %c0_i32_2 = arith.constant 0 : i32
    return %c0_i32, %c0_i32_0, %c0_i32_1 : i32, i32, i32
  }
  func.func @transform_2(%arg0: i32) -> (i32, i32) {
    %c0_i32 = arith.constant 0 : i32
    %c0_i32_0 = arith.constant 0 : i32
    %c0_i32_1 = arith.constant 0 : i32
    return %c0_i32, %c0_i32_0 : i32, i32
  }
  func.func @transform_3(%arg0: i32) -> (i32, i32) {
    %c0_i32 = arith.constant 0 : i32
    %c0_i32_0 = arith.constant 0 : i32
    %c0_i32_1 = arith.constant 0 : i32
    return %c0_i32, %c0_i32_0 : i32, i32
  }
  func.func @transform_4(%arg0: i32) -> (i32, i32) {
    %c0_i32 = arith.constant 0 : i32
    %c0_i32_0 = arith.constant 0 : i32
    %c0_i32_1 = arith.constant 0 : i32
    return %c0_i32, %c0_i32_0 : i32, i32
  }
  func.func @transform_5(%arg0: i32) -> (i32, i32) {
    %c0_i32 = arith.constant 0 : i32
    %c0_i32_0 = arith.constant 0 : i32
    return %arg0, %c0_i32 : i32, i32
  }
}

</mosaic_0001>

<llo_original>
// kernel: tpu_custom_call.1
$region0: #{tpu_custom_call.1}
  #allocation0 [shape = 'u32[]', space=smem, size = 0x4, offset = 0x4, fixed_abs, tag = 'smem constant byte address 0x4 - core index']
  #allocation1 [shape = 'u32[144,128]{1,0:T(1,128)}', space=vmem, size = 0x12000, scoped, tag = 'internal scratch']
  %s0 = inlined_call_operand.vmem [shape: f32[512,32], index: 0, kind: input, shape index: {}]
  %s1 = inlined_call_operand.vmem [shape: f32[3,1,128], index: 1, kind: input, shape index: {}]
  %s2 = inlined_call_operand.vmem [shape: bf16[32,128], index: 2, kind: input, shape index: {}]
  %s3 = inlined_call_operand.vmem [shape: bf16[128,128], index: 3, kind: input, shape index: {}]
  %s4 = inlined_call_operand.vmem [shape: bf16[128,16], index: 4, kind: input, shape index: {}]
  %s5 = inlined_call_operand.vmem [shape: f32[512,16], index: 5, kind: output, shape index: {}]
  %s6 = sld [smem:[#allocation0]]
  $region53: #{tpu_custom_call.1} parent=0
    _
  %s8 = ssub.s32 1, %s6
  %s9 = scalar_select 0, %s8, %s6
  loop: start=0, step=1, limit=4
  $region2: #{tpu_custom_call.1} parent=0 // loop_pre_header
    _
  $region3: #{tpu_custom_call.1} parent=0 // loop_header
    %s11 = sphi 0, %s15
    %p12 = scmp.ge.s32.totalorder %s11, 4
    %s21 = sphi 0, %s23
    %s24 = sphi 0, %s21
    %s25 = sphi 0, %s24
    %s41 = sphi 0, %s25
    %s45 = sphi 0, %s45
    %s47 = sphi 0, %s45
    %s48 = sphi 0, %s47
    %s62 = sphi 0, %s48
    %s66 = sphi 0, %s66
    %s68 = sphi 0, %s66
    %s69 = sphi 0, %s68
    %s83 = sphi 0, %s69
    %s87 = sphi 0, %s87
    %s89 = sphi 0, %s87
    %s90 = sphi 0, %s89
    %s104 = sphi 0, %s90
    %s108 = sphi 0, %s108
    %s110 = sphi 0, %s108
    %s111 = sphi 0, %s110
    %s125 = sphi 0, %s111
    %s131 = sphi 0, %s133
    %s134 = sphi 0, %s131
    %s135 = sphi 0, %s134
    %s151 = sphi 0, %s135
  $region4: #{tpu_custom_call.1} parent=0 // loop_header_branch
    %14 = sbr.rel (%p12) target = $region8
  $region5: #{tpu_custom_call.1} parent=0 // loop_body
    %s16 = ssub.s32 %s11, 1
    %s17 = ssub.s32 %s11, 2
    %s18 = sadd.s32 %s11, 1
    %s19 = ssub.s32 %s11, %s18
    %p20 = scmp.eq.s32.totalorder %s19, 0
    %s22 = sadd.s32 %s21, 1
    %s23 = scalar_select %p20, %s21, %s22
    %p26 = pneg %p20
    %p27 = scmp.eq.s32.totalorder %s11, 1
    %p28 = por %p26, %p27
    %p29 = scmp.ne.s32.totalorder %s21, %s24
    %p30 = scmp.eq.s32.totalorder %s11, 0
    %p31 = por %p29, %p30
    %p32 = scmp.ne.s32.totalorder %s21, %s24
    %p33 = scmp.eq.s32.totalorder %s16, 1
    %p34 = por %p32, %p33
    %p35 = scmp.ne.s32.totalorder %s24, %s25
    %p36 = scmp.eq.s32.totalorder %s16, 0
    %p37 = por %p35, %p36
    %p38 = scmp.ne.s32.totalorder %s24, %s25
    %p39 = scmp.eq.s32.totalorder %s17, 1
    %p40 = por %p38, %p39
    %p42 = scmp.ne.s32.totalorder %s25, %s41
    %p43 = scmp.eq.s32.totalorder %s17, 0
    %p44 = por %p42, %p43
    %s46 = sadd.s32 %s45, 1
    %p49 = scmp.eq.s32.totalorder %s11, 1
    %p50 = scmp.ne.s32.totalorder %s45, %s47
    %p51 = scmp.eq.s32.totalorder %s11, 0
    %p52 = por %p50, %p51
    %p53 = scmp.ne.s32.totalorder %s45, %s47
    %p54 = scmp.eq.s32.totalorder %s16, 1
    %p55 = por %p53, %p54
    %p56 = scmp.ne.s32.totalorder %s47, %s48
    %p57 = scmp.eq.s32.totalorder %s16, 0
    %p58 = por %p56, %p57
    %p59 = scmp.ne.s32.totalorder %s47, %s48
    %p60 = scmp.eq.s32.totalorder %s17, 1
    %p61 = por %p59, %p60
    %p63 = scmp.ne.s32.totalorder %s48, %s62
    %p64 = scmp.eq.s32.totalorder %s17, 0
    %p65 = por %p63, %p64
    %s67 = sadd.s32 %s66, 1
    %p70 = scmp.eq.s32.totalorder %s11, 1
    %p71 = scmp.ne.s32.totalorder %s66, %s68
    %p72 = scmp.eq.s32.totalorder %s11, 0
    %p73 = por %p71, %p72
    %p74 = scmp.ne.s32.totalorder %s66, %s68
    %p75 = scmp.eq.s32.totalorder %s16, 1
    %p76 = por %p74, %p75
    %p77 = scmp.ne.s32.totalorder %s68, %s69
    %p78 = scmp.eq.s32.totalorder %s16, 0
    %p79 = por %p77, %p78
    %p80 = scmp.ne.s32.totalorder %s68, %s69
    %p81 = scmp.eq.s32.totalorder %s17, 1
    %p82 = por %p80, %p81
    %p84 = scmp.ne.s32.totalorder %s69, %s83
    %p85 = scmp.eq.s32.totalorder %s17, 0
    %p86 = por %p84, %p85
    %s88 = sadd.s32 %s87, 1
    %p91 = scmp.eq.s32.totalorder %s11, 1
    %p92 = scmp.ne.s32.totalorder %s87, %s89
    %p93 = scmp.eq.s32.totalorder %s11, 0
    %p94 = por %p92, %p93
    %p95 = scmp.ne.s32.totalorder %s87, %s89
    %p96 = scmp.eq.s32.totalorder %s16, 1
    %p97 = por %p95, %p96
    %p98 = scmp.ne.s32.totalorder %s89, %s90
    %p99 = scmp.eq.s32.totalorder %s16, 0
    %p100 = por %p98, %p99
    %p101 = scmp.ne.s32.totalorder %s89, %s90
    %p102 = scmp.eq.s32.totalorder %s17, 1
    %p103 = por %p101, %p102
    %p105 = scmp.ne.s32.totalorder %s90, %s104
    %p106 = scmp.eq.s32.totalorder %s17, 0
    %p107 = por %p105, %p106
    %s109 = sadd.s32 %s108, 1
    %p112 = scmp.eq.s32.totalorder %s11, 1
    %p113 = scmp.ne.s32.totalorder %s108, %s110
    %p114 = scmp.eq.s32.totalorder %s11, 0
    %p115 = por %p113, %p114
    %p116 = scmp.ne.s32.totalorder %s108, %s110
    %p117 = scmp.eq.s32.totalorder %s16, 1
    %p118 = por %p116, %p117
    %p119 = scmp.ne.s32.totalorder %s110, %s111
    %p120 = scmp.eq.s32.totalorder %s16, 0
    %p121 = por %p119, %p120
    %p122 = scmp.ne.s32.totalorder %s110, %s111
    %p123 = scmp.eq.s32.totalorder %s17, 1
    %p124 = por %p122, %p123
    %p126 = scmp.ne.s32.totalorder %s111, %s125
    %p127 = scmp.eq.s32.totalorder %s17, 0
    %p128 = por %p126, %p127
    %s129 = ssub.s32 %s11, %s18
    %p130 = scmp.eq.s32.totalorder %s129, 0
    %s132 = sadd.s32 %s131, 1
    %s133 = scalar_select %p130, %s131, %s132
    %p136 = pneg %p130
    %p137 = scmp.eq.s32.totalorder %s11, 1
    %p138 = por %p136, %p137
    %p139 = scmp.ne.s32.totalorder %s131, %s134
    %p140 = scmp.eq.s32.totalorder %s11, 0
    %p141 = por %p139, %p140
    %p142 = scmp.ne.s32.totalorder %s131, %s134
    %p143 = scmp.eq.s32.totalorder %s16, 1
    %p144 = por %p142, %p143
    %p145 = scmp.ne.s32.totalorder %s134, %s135
    %p146 = scmp.eq.s32.totalorder %s16, 0
    %p147 = por %p145, %p146
    %p148 = scmp.ne.s32.totalorder %s134, %s135
    %p149 = scmp.eq.s32.totalorder %s17, 1
    %p150 = por %p148, %p149
    %p152 = scmp.ne.s32.totalorder %s135, %s151
    %p153 = scmp.eq.s32.totalorder %s17, 0
    %p154 = por %p152, %p153
    %p155 = scmp.le.s32.totalorder 1, %s11
    %p156 = scmp.lt.s32.totalorder %s11, 3
    %p157 = pnand %p155, %p156
    %p158 = pneg %p157
    // Predicated region
    $region9: #{tpu_custom_call.1} parent=5 // pred_check
      _
    $region10: #{tpu_custom_call.1} parent=5 // pred_check_branch
      %160 = sbr.rel (%p157) target = $region12
    $region11: #{tpu_custom_call.1} parent=5 // pred_region
      %s161 = ssub.s32 %s11, 1
      // Predicated region
      $region13: #{tpu_custom_call.1} parent=11 // pred_check
        %p162 = pneg %p58
      $region14: #{tpu_custom_call.1} parent=11 // pred_check_branch
        %164 = sbr.rel (%p162) target = $region16
      $region15: #{tpu_custom_call.1} parent=11 // pred_region
        _
      $region16: #{tpu_custom_call.1} parent=11 // pred_fallthru
        _
      // Predicated region
      $region17: #{tpu_custom_call.1} parent=11 // pred_check
        %p165 = pneg %p79
      $region18: #{tpu_custom_call.1} parent=11 // pred_check_branch
        %167 = sbr.rel (%p165) target = $region20
      $region19: #{tpu_custom_call.1} parent=11 // pred_region
        _
      $region20: #{tpu_custom_call.1} parent=11 // pred_fallthru
        _
      // Predicated region
      $region21: #{tpu_custom_call.1} parent=11 // pred_check
        %p168 = pneg %p100
      $region22: #{tpu_custom_call.1} parent=11 // pred_check_branch
        %170 = sbr.rel (%p168) target = $region24
      $region23: #{tpu_custom_call.1} parent=11 // pred_region
        _
      $region24: #{tpu_custom_call.1} parent=11 // pred_fallthru
        _
      // Predicated region
      $region25: #{tpu_custom_call.1} parent=11 // pred_check
        %p171 = pneg %p121
      $region26: #{tpu_custom_call.1} parent=11 // pred_check_branch
        %173 = sbr.rel (%p171) target = $region28
      $region27: #{tpu_custom_call.1} parent=11 // pred_region
        _
      $region28: #{tpu_custom_call.1} parent=11 // pred_fallthru
        _
    $region12: #{tpu_custom_call.1} parent=5 // pred_fallthru
      _
    %p174 = scmp.lt.s32.totalorder %s11, 2
    // Predicated region
    $region29: #{tpu_custom_call.1} parent=5 // pred_check
      %p175 = pneg %p174
    $region30: #{tpu_custom_call.1} parent=5 // pred_check_branch
      %177 = sbr.rel (%p175) target = $region32
    $region31: #{tpu_custom_call.1} parent=5 // pred_region
      // Predicated region
      $region33: #{tpu_custom_call.1} parent=31 // pred_check
        %p178 = pneg %p31
      $region34: #{tpu_custom_call.1} parent=31 // pred_check_branch
        %180 = sbr.rel (%p178) target = $region36
      $region35: #{tpu_custom_call.1} parent=31 // pred_region
        %s181 = smul.u32 32, %s11
        %p182 = scmp.lt.s32.totalorder %s181, 63
        %s183 = scalar_select %p182, %s181, 63
        %s184 = smul.addr %s183, 8
        %s185 = scalar_lea.vmem %s0, %s184
        %s186 = smul.u32 32, %s11
      $region36: #{tpu_custom_call.1} parent=31 // pred_fallthru
        _
    $region32: #{tpu_custom_call.1} parent=5 // pred_fallthru
      _
    %p187 = scmp.le.s32.totalorder 1, %s11
    %p188 = scmp.lt.s32.totalorder %s11, 3
    %p189 = pnand %p187, %p188
    %p190 = pneg %p189
    // Predicated region
    $region37: #{tpu_custom_call.1} parent=5 // pred_check
      _
    $region38: #{tpu_custom_call.1} parent=5 // pred_check_branch
      %192 = sbr.rel (%p189) target = $region40
    $region39: #{tpu_custom_call.1} parent=5 // pred_region
      %s193 = ssub.s32 %s11, 1
      %s194 = smul.u32 32, %s16
      %p195 = scmp.lt.s32.totalorder %s194, 63
      %s196 = scalar_select %p195, %s194, 63
      %s197 = smul.addr %s196, 8
      %s198 = scalar_lea.vmem %s0, %s197
      %p199 = pneg %p37
      %p200 = pneg %p34
      %p201 = pneg %p58
      %p202 = pneg %p55
      %p203 = pneg %p79
      %p204 = pneg %p76
      %p205 = pneg %p100
      %p206 = pneg %p97
      %p207 = pneg %p121
      %p208 = pneg %p118
      %p209 = pneg %p147
      %p210 = pneg %p144
      %s211 = smul.u32 32, %s16
      %p212 = scmp.lt.s32.totalorder %s211, 63
      %s213 = scalar_select %p212, %s211, 63
      %s214 = smul.addr %s213, 8
      %s215 = scalar_lea.vmem %s5, %s214
      %s216 = smul.u32 32, %s16
      %p217 = scmp.lt.s32.totalorder %s216, 63
      %s218 = scalar_select %p217, %s216, 63
      %s219 = smul.addr %s218, 8
      %s220 = scalar_lea.vmem %s0, %s219
      %s221 = smul.u32 32, %s16
      %s222 = smul.u32 32, %s16
      %p223 = scmp.lt.s32.totalorder %s222, 63
      %s224 = scalar_select %p223, %s222, 63
      %s225 = smul.addr %s224, 8
      %s226 = scalar_lea.vmem %s5, %s225
      %s227 = smul.u32 32, %s16
      %v229 = vld [vmem:[%s220] sm:$0xff]
      %v230 = vld [vmem:[%s220 + $0x8] sm:$0xff]
      %v231 = vld [vmem:[%s220 + $0x10] sm:$0xff]
      %v232 = vld [vmem:[%s220 + $0x18] sm:$0xff]
      %v233 = vld [vmem:[%s220 + $0x20] sm:$0xff]
      %v234 = vld [vmem:[%s220 + $0x28] sm:$0xff]
      %v235 = vld [vmem:[%s220 + $0x30] sm:$0xff]
      %v236 = vld [vmem:[%s220 + $0x38] sm:$0xff]
      %v237 = vld [vmem:[%s220 + $0x40] sm:$0xff]
      %v238 = vld [vmem:[%s220 + $0x48] sm:$0xff]
      %v239 = vld [vmem:[%s220 + $0x50] sm:$0xff]
      %v240 = vld [vmem:[%s220 + $0x58] sm:$0xff]
      %v241 = vld [vmem:[%s220 + $0x60] sm:$0xff]
      %v242 = vld [vmem:[%s220 + $0x68] sm:$0xff]
      %v243 = vld [vmem:[%s220 + $0x70] sm:$0xff]
      %v244 = vld [vmem:[%s220 + $0x78] sm:$0xff]
      %v245 = vld [vmem:[%s220 + $0x80] sm:$0xff]
      %v246 = vld [vmem:[%s220 + $0x88] sm:$0xff]
      %v247 = vld [vmem:[%s220 + $0x90] sm:$0xff]
      %v248 = vld [vmem:[%s220 + $0x98] sm:$0xff]
      %v249 = vld [vmem:[%s220 + $0xa0] sm:$0xff]
      %v250 = vld [vmem:[%s220 + $0xa8] sm:$0xff]
      %v251 = vld [vmem:[%s220 + $0xb0] sm:$0xff]
      %v252 = vld [vmem:[%s220 + $0xb8] sm:$0xff]
      %v253 = vld [vmem:[%s220 + $0xc0] sm:$0xff]
      %v254 = vld [vmem:[%s220 + $0xc8] sm:$0xff]
      %v255 = vld [vmem:[%s220 + $0xd0] sm:$0xff]
      %v256 = vld [vmem:[%s220 + $0xd8] sm:$0xff]
      %v257 = vld [vmem:[%s220 + $0xe0] sm:$0xff]
      %v258 = vld [vmem:[%s220 + $0xe8] sm:$0xff]
      %v259 = vld [vmem:[%s220 + $0xf0] sm:$0xff]
      %v260 = vld [vmem:[%s220 + $0xf8] sm:$0xff]
      %v261 = vpack.c.bf16 %v230, %v229
      %v262 = vpack.c.bf16 %v232, %v231
      %v263 = vpack.c.bf16 %v234, %v233
      %v264 = vpack.c.bf16 %v236, %v235
      %v265 = vpack.c.bf16 %v238, %v237
      %v266 = vpack.c.bf16 %v240, %v239
      %v267 = vpack.c.bf16 %v242, %v241
      %v268 = vpack.c.bf16 %v244, %v243
      %v269 = vpack.c.bf16 %v246, %v245
      %v270 = vpack.c.bf16 %v248, %v247
      %v271 = vpack.c.bf16 %v250, %v249
      %v272 = vpack.c.bf16 %v252, %v251
      %v273 = vpack.c.bf16 %v254, %v253
      %v274 = vpack.c.bf16 %v256, %v255
      %v275 = vpack.c.bf16 %v258, %v257
      %v276 = vpack.c.bf16 %v260, %v259
      %v277 = vld [vmem:[%s2] sm:$0xf]
      %v278 = vld [vmem:[%s2 + $0x4] sm:$0xf]
      %v279 = vld [vmem:[%s2 + $0x8] sm:$0xf]
      %v280 = vld [vmem:[%s2 + $0xc] sm:$0xf]
      %v281 = vld [vmem:[%s1] sm:$0x1]
      %v283 = vlaneseq
      %v284 = vshrl.u32 %v283, 7
      %v285 = vsub.s32 0, %v284
      %v286 = vrot.slane %v281, %v285
      %v292 = vunpack.c.l.b16 %v277
      %v293 = vunpack.c.l.b16 %v278
      %v294 = vunpack.c.l.b16 %v279
      %v295 = vunpack.c.l.b16 %v280
      %v296 = vpack.c.b16 %v293, %v292
      %v297 = vpack.c.b16 %v295, %v294
      %vm300 = vcmask 261120
      %v302 = vsel %vm300, %v261, 0
      %v305 = vsel %vm300, %v262, 0
      %v308 = vsel %vm300, %v263, 0
      %v311 = vsel %vm300, %v264, 0
      %v314 = vsel %vm300, %v265, 0
      %v317 = vsel %vm300, %v266, 0
      %v320 = vsel %vm300, %v267, 0
      %v323 = vsel %vm300, %v268, 0
      %v326 = vsel %vm300, %v269, 0
      %v329 = vsel %vm300, %v270, 0
      %v332 = vsel %vm300, %v271, 0
      %v335 = vsel %vm300, %v272, 0
      %v338 = vsel %vm300, %v273, 0
      %v341 = vsel %vm300, %v274, 0
      %v344 = vsel %vm300, %v275, 0
      %v347 = vsel %vm300, %v276, 0
      %349 = vmatprep.subr.bf16.mxu0 0
      %350 = vmatpush1.bf16.msra.mxu0 0
      %351 = vmatprep.subr.bf16.mxu0 0
      %352 = vmatpush1.bf16.msra.mxu0 0
      %353 = vmatprep.subr.bf16.mxu0 0
      %354 = vmatpush1.bf16.msra.mxu0 0
      %355 = vmatprep.subr.bf16.mxu0 0
      %356 = vmatpush1.bf16.msra.mxu0 0
      %357 = vmatprep.subr.bf16.mxu0 0
      %358 = vmatpush1.bf16.msra.mxu0 0
      %359 = vmatprep.subr.bf16.mxu0 0
      %360 = vmatpush1.bf16.msra.mxu0 0
      %361 = vmatprep.subr.bf16.mxu0 0
      %362 = vmatpush1.bf16.msra.mxu0 %v297
      %363 = vmatprep.subr.bf16.mxu0 0
      %364 = vmatpush1.bf16.msra.mxu0 %v296
      %365 = vmatprep.subr.bf16.mxu0 0
      %366 = vmatpush2.bf16.msra.mxu0 0
      %367 = vmatprep.subr.bf16.mxu0 0
      %368 = vmatpush2.bf16.msra.mxu0 0
      %369 = vmatprep.subr.bf16.mxu0 0
      %370 = vmatpush2.bf16.msra.mxu0 0
      %371 = vmatprep.subr.bf16.mxu0 0
      %372 = vmatpush2.bf16.msra.mxu0 0
      %373 = vmatprep.subr.bf16.mxu0 0
      %374 = vmatpush2.bf16.msra.mxu0 0
      %375 = vmatprep.subr.bf16.mxu0 0
      %376 = vmatpush2.bf16.msra.mxu0 0
      %377 = vmatprep.subr.bf16.mxu0 0
      %378 = vmatpush2.bf16.msra.mxu0 0
      %379 = vmatprep.subr.bf16.mxu0 0
      %380 = vmatpush2.bf16.msra.mxu0 0
      %381 = vmatprep.mubr.bf16.mxu0 0
      %382 = vmatmul.mubr.bf16.gmra.mxu0 %v302
      %v383 = vpop.f32.mrf.mxu0
      %v384 = vadd.f32 %v286, %v383
      %v385 = vpop.f32.mrf.mxu0
      %v386 = vpop.f32.mrf.mxu0
      %v387 = vadd.f32 %v286, %v386
      %v388 = vpop.f32.mrf.mxu0
      %389 = vmatprep.mubr.bf16.mxu0 0
      %390 = vmatmul.mubr.bf16.gmra.mxu0 %v305
      %v391 = vpop.f32.mrf.mxu0
      %v392 = vadd.f32 %v286, %v391
      %v393 = vpop.f32.mrf.mxu0
      %v394 = vpop.f32.mrf.mxu0
      %v395 = vadd.f32 %v286, %v394
      %v396 = vpop.f32.mrf.mxu0
      %397 = vmatprep.mubr.bf16.mxu0 0
      %398 = vmatmul.mubr.bf16.gmra.mxu0 %v308
      %v399 = vpop.f32.mrf.mxu0
      %v400 = vadd.f32 %v286, %v399
      %v401 = vpop.f32.mrf.mxu0
      %v402 = vpop.f32.mrf.mxu0
      %v403 = vadd.f32 %v286, %v402
      %v404 = vpop.f32.mrf.mxu0
      %405 = vmatprep.mubr.bf16.mxu0 0
      %406 = vmatmul.mubr.bf16.gmra.mxu0 %v311
      %v407 = vpop.f32.mrf.mxu0
      %v408 = vadd.f32 %v286, %v407
      %v409 = vpop.f32.mrf.mxu0
      %v410 = vpop.f32.mrf.mxu0
      %v411 = vadd.f32 %v286, %v410
      %v412 = vpop.f32.mrf.mxu0
      %413 = vmatprep.mubr.bf16.mxu0 0
      %414 = vmatmul.mubr.bf16.gmra.mxu0 %v314
      %v415 = vpop.f32.mrf.mxu0
      %v416 = vadd.f32 %v286, %v415
      %v417 = vpop.f32.mrf.mxu0
      %v418 = vpop.f32.mrf.mxu0
      %v419 = vadd.f32 %v286, %v418
      %v420 = vpop.f32.mrf.mxu0
      %421 = vmatprep.mubr.bf16.mxu0 0
      %422 = vmatmul.mubr.bf16.gmra.mxu0 %v317
      %v423 = vpop.f32.mrf.mxu0
      %v424 = vadd.f32 %v286, %v423
      %v425 = vpop.f32.mrf.mxu0
      %v426 = vpop.f32.mrf.mxu0
      %v427 = vadd.f32 %v286, %v426
      %v428 = vpop.f32.mrf.mxu0
      %429 = vmatprep.mubr.bf16.mxu0 0
      %430 = vmatmul.mubr.bf16.gmra.mxu0 %v320
      %v431 = vpop.f32.mrf.mxu0
      %v432 = vadd.f32 %v286, %v431
      %v433 = vpop.f32.mrf.mxu0
      %v434 = vpop.f32.mrf.mxu0
      %v435 = vadd.f32 %v286, %v434
      %v436 = vpop.f32.mrf.mxu0
      %437 = vmatprep.mubr.bf16.mxu0 0
      %438 = vmatmul.mubr.bf16.gmra.mxu0 %v323
      %v439 = vpop.f32.mrf.mxu0
      %v440 = vadd.f32 %v286, %v439
      %v441 = vpop.f32.mrf.mxu0
      %v442 = vpop.f32.mrf.mxu0
      %v443 = vadd.f32 %v286, %v442
      %v444 = vpop.f32.mrf.mxu0
      %445 = vmatprep.mubr.bf16.mxu0 0
      %446 = vmatmul.mubr.bf16.gmra.mxu0 %v326
      %v447 = vpop.f32.mrf.mxu0
      %v448 = vadd.f32 %v286, %v447
      %v449 = vpop.f32.mrf.mxu0
      %v450 = vpop.f32.mrf.mxu0
      %v451 = vadd.f32 %v286, %v450
      %v452 = vpop.f32.mrf.mxu0
      %453 = vmatprep.mubr.bf16.mxu0 0
      %454 = vmatmul.mubr.bf16.gmra.mxu0 %v329
      %v455 = vpop.f32.mrf.mxu0
      %v456 = vadd.f32 %v286, %v455
      %v457 = vpop.f32.mrf.mxu0
      %v458 = vpop.f32.mrf.mxu0
      %v459 = vadd.f32 %v286, %v458
      %v460 = vpop.f32.mrf.mxu0
      %461 = vmatprep.mubr.bf16.mxu0 0
      %462 = vmatmul.mubr.bf16.gmra.mxu0 %v332
      %v463 = vpop.f32.mrf.mxu0
      %v464 = vadd.f32 %v286, %v463
      %v465 = vpop.f32.mrf.mxu0
      %v466 = vpop.f32.mrf.mxu0
      %v467 = vadd.f32 %v286, %v466
      %v468 = vpop.f32.mrf.mxu0
      %469 = vmatprep.mubr.bf16.mxu0 0
      %470 = vmatmul.mubr.bf16.gmra.mxu0 %v335
      %v471 = vpop.f32.mrf.mxu0
      %v472 = vadd.f32 %v286, %v471
      %v473 = vpop.f32.mrf.mxu0
      %v474 = vpop.f32.mrf.mxu0
      %v475 = vadd.f32 %v286, %v474
      %v476 = vpop.f32.mrf.mxu0
      %477 = vmatprep.mubr.bf16.mxu0 0
      %478 = vmatmul.mubr.bf16.gmra.mxu0 %v338
      %v479 = vpop.f32.mrf.mxu0
      %v480 = vadd.f32 %v286, %v479
      %v481 = vpop.f32.mrf.mxu0
      %v482 = vpop.f32.mrf.mxu0
      %v483 = vadd.f32 %v286, %v482
      %v484 = vpop.f32.mrf.mxu0
      %485 = vmatprep.mubr.bf16.mxu0 0
      %486 = vmatmul.mubr.bf16.gmra.mxu0 %v341
      %v487 = vpop.f32.mrf.mxu0
      %v488 = vadd.f32 %v286, %v487
      %v489 = vpop.f32.mrf.mxu0
      %v490 = vpop.f32.mrf.mxu0
      %v491 = vadd.f32 %v286, %v490
      %v492 = vpop.f32.mrf.mxu0
      %493 = vmatprep.mubr.bf16.mxu0 0
      %494 = vmatmul.mubr.bf16.gmra.mxu0 %v344
      %v495 = vpop.f32.mrf.mxu0
      %v496 = vadd.f32 %v286, %v495
      %v497 = vpop.f32.mrf.mxu0
      %v498 = vpop.f32.mrf.mxu0
      %v499 = vadd.f32 %v286, %v498
      %v500 = vpop.f32.mrf.mxu0
      %501 = vmatprep.mubr.bf16.mxu0 0
      %502 = vmatmul.mubr.bf16.gmra.mxu0 %v347
      %v503 = vpop.f32.mrf.mxu0
      %v504 = vadd.f32 %v286, %v503
      %v505 = vpop.f32.mrf.mxu0
      %v506 = vpop.f32.mrf.mxu0
      %v507 = vadd.f32 %v286, %v506
      %v508 = vpop.f32.mrf.mxu0
      %509 = vdwg.mxu0
      %v510 = vmax.f32 %v384, 0.0
      %v511 = vmax.f32 %v387, 0.0
      %v512 = vmax.f32 %v392, 0.0
      %v513 = vmax.f32 %v395, 0.0
      %v514 = vmax.f32 %v400, 0.0
      %v515 = vmax.f32 %v403, 0.0
      %v516 = vmax.f32 %v408, 0.0
      %v517 = vmax.f32 %v411, 0.0
      %v518 = vmax.f32 %v416, 0.0
      %v519 = vmax.f32 %v419, 0.0
      %v520 = vmax.f32 %v424, 0.0
      %v521 = vmax.f32 %v427, 0.0
      %v522 = vmax.f32 %v432, 0.0
      %v523 = vmax.f32 %v435, 0.0
      %v524 = vmax.f32 %v440, 0.0
      %v525 = vmax.f32 %v443, 0.0
      %v526 = vmax.f32 %v448, 0.0
      %v527 = vmax.f32 %v451, 0.0
      %v528 = vmax.f32 %v456, 0.0
      %v529 = vmax.f32 %v459, 0.0
      %v530 = vmax.f32 %v464, 0.0
      %v531 = vmax.f32 %v467, 0.0
      %v532 = vmax.f32 %v472, 0.0
      %v533 = vmax.f32 %v475, 0.0
      %v534 = vmax.f32 %v480, 0.0
      %v535 = vmax.f32 %v483, 0.0
      %v536 = vmax.f32 %v488, 0.0
      %v537 = vmax.f32 %v491, 0.0
      %v538 = vmax.f32 %v496, 0.0
      %v539 = vmax.f32 %v499, 0.0
      %v540 = vmax.f32 %v504, 0.0
      %v541 = vmax.f32 %v507, 0.0
      %v542 = vpack.c.bf16 %v511, %v510
      %v543 = vpack.c.bf16 %v513, %v512
      %v544 = vpack.c.bf16 %v515, %v514
      %v545 = vpack.c.bf16 %v517, %v516
      %v546 = vpack.c.bf16 %v519, %v518
      %v547 = vpack.c.bf16 %v521, %v520
      %v548 = vpack.c.bf16 %v523, %v522
      %v549 = vpack.c.bf16 %v525, %v524
      %v550 = vpack.c.bf16 %v527, %v526
      %v551 = vpack.c.bf16 %v529, %v528
      %v552 = vpack.c.bf16 %v531, %v530
      %v553 = vpack.c.bf16 %v533, %v532
      %v554 = vpack.c.bf16 %v535, %v534
      %v555 = vpack.c.bf16 %v537, %v536
      %v556 = vpack.c.bf16 %v539, %v538
      %v557 = vpack.c.bf16 %v541, %v540
      %v558 = vld [vmem:[%s3] sm:$0xf]
      %v559 = vld [vmem:[%s3 + $0x4] sm:$0xf]
      %v560 = vld [vmem:[%s3 + $0x8] sm:$0xf]
      %v561 = vld [vmem:[%s3 + $0xc] sm:$0xf]
      %v562 = vld [vmem:[%s3 + $0x10] sm:$0xf]
      %v563 = vld [vmem:[%s3 + $0x14] sm:$0xf]
      %v564 = vld [vmem:[%s3 + $0x18] sm:$0xf]
      %v565 = vld [vmem:[%s3 + $0x1c] sm:$0xf]
      %v566 = vld [vmem:[%s3 + $0x20] sm:$0xf]
      %v567 = vld [vmem:[%s3 + $0x24] sm:$0xf]
      %v568 = vld [vmem:[%s3 + $0x28] sm:$0xf]
      %v569 = vld [vmem:[%s3 + $0x2c] sm:$0xf]
      %v570 = vld [vmem:[%s3 + $0x30] sm:$0xf]
      %v571 = vld [vmem:[%s3 + $0x34] sm:$0xf]
      %v572 = vld [vmem:[%s3 + $0x38] sm:$0xf]
      %v573 = vld [vmem:[%s3 + $0x3c] sm:$0xf]
      %s574 = scalar_lea.vmem %s1, 1
      %v575 = vld [vmem:[%s574] sm:$0x1]
      %v577 = vlaneseq
      %v578 = vshrl.u32 %v577, 7
      %v579 = vsub.s32 0, %v578
      %v580 = vrot.slane %v575, %v579
      %v598 = vunpack.c.l.b16 %v558
      %v599 = vunpack.c.l.b16 %v559
      %v600 = vunpack.c.l.b16 %v560
      %v601 = vunpack.c.l.b16 %v561
      %v602 = vunpack.c.l.b16 %v562
      %v603 = vunpack.c.l.b16 %v563
      %v604 = vunpack.c.l.b16 %v564
      %v605 = vunpack.c.l.b16 %v565
      %v606 = vunpack.c.l.b16 %v566
      %v607 = vunpack.c.l.b16 %v567
      %v608 = vunpack.c.l.b16 %v568
      %v609 = vunpack.c.l.b16 %v569
      %v610 = vunpack.c.l.b16 %v570
      %v611 = vunpack.c.l.b16 %v571
      %v612 = vunpack.c.l.b16 %v572
      %v613 = vunpack.c.l.b16 %v573
      %v614 = vpack.c.b16 %v599, %v598
      %v615 = vpack.c.b16 %v601, %v600
      %v616 = vpack.c.b16 %v603, %v602
      %v617 = vpack.c.b16 %v605, %v604
      %v618 = vpack.c.b16 %v607, %v606
      %v619 = vpack.c.b16 %v609, %v608
      %v620 = vpack.c.b16 %v611, %v610
      %v621 = vpack.c.b16 %v613, %v612
      %630 = vmatprep.subr.bf16.mxu0 0
      %631 = vmatpush1.bf16.msra.mxu0 %v621
      %632 = vmatprep.subr.bf16.mxu0 0
      %633 = vmatpush1.bf16.msra.mxu0 %v620
      %634 = vmatprep.subr.bf16.mxu0 0
      %635 = vmatpush1.bf16.msra.mxu0 %v619
      %636 = vmatprep.subr.bf16.mxu0 0
      %637 = vmatpush1.bf16.msra.mxu0 %v618
      %638 = vmatprep.subr.bf16.mxu0 0
      %639 = vmatpush1.bf16.msra.mxu0 %v617
      %640 = vmatprep.subr.bf16.mxu0 0
      %641 = vmatpush1.bf16.msra.mxu0 %v616
      %642 = vmatprep.subr.bf16.mxu0 0
      %643 = vmatpush1.bf16.msra.mxu0 %v615
      %644 = vmatprep.subr.bf16.mxu0 0
      %645 = vmatpush1.bf16.msra.mxu0 %v614
      %646 = vmatprep.subr.bf16.mxu0 0
      %647 = vmatpush2.bf16.msra.mxu0 0
      %648 = vmatprep.subr.bf16.mxu0 0
      %649 = vmatpush2.bf16.msra.mxu0 0
      %650 = vmatprep.subr.bf16.mxu0 0
      %651 = vmatpush2.bf16.msra.mxu0 0
      %652 = vmatprep.subr.bf16.mxu0 0
      %653 = vmatpush2.bf16.msra.mxu0 0
      %654 = vmatprep.subr.bf16.mxu0 0
      %655 = vmatpush2.bf16.msra.mxu0 0
      %656 = vmatprep.subr.bf16.mxu0 0
      %657 = vmatpush2.bf16.msra.mxu0 0
      %658 = vmatprep.subr.bf16.mxu0 0
      %659 = vmatpush2.bf16.msra.mxu0 0
      %660 = vmatprep.subr.bf16.mxu0 0
      %661 = vmatpush2.bf16.msra.mxu0 0
      %662 = vmatprep.mubr.bf16.mxu0 0
      %663 = vmatmul.mubr.bf16.gmra.mxu0 %v542
      %v664 = vpop.f32.mrf.mxu0
      %v665 = vadd.f32 %v580, %v664
      %v666 = vpop.f32.mrf.mxu0
      %v667 = vpop.f32.mrf.mxu0
      %v668 = vadd.f32 %v580, %v667
      %v669 = vpop.f32.mrf.mxu0
      %670 = vmatprep.mubr.bf16.mxu0 0
      %671 = vmatmul.mubr.bf16.gmra.mxu0 %v543
      %v672 = vpop.f32.mrf.mxu0
      %v673 = vadd.f32 %v580, %v672
      %v674 = vpop.f32.mrf.mxu0
      %v675 = vpop.f32.mrf.mxu0
      %v676 = vadd.f32 %v580, %v675
      %v677 = vpop.f32.mrf.mxu0
      %678 = vmatprep.mubr.bf16.mxu0 0
      %679 = vmatmul.mubr.bf16.gmra.mxu0 %v544
      %v680 = vpop.f32.mrf.mxu0
      %v681 = vadd.f32 %v580, %v680
      %v682 = vpop.f32.mrf.mxu0
      %v683 = vpop.f32.mrf.mxu0
      %v684 = vadd.f32 %v580, %v683
      %v685 = vpop.f32.mrf.mxu0
      %686 = vmatprep.mubr.bf16.mxu0 0
      %687 = vmatmul.mubr.bf16.gmra.mxu0 %v545
      %v688 = vpop.f32.mrf.mxu0
      %v689 = vadd.f32 %v580, %v688
      %v690 = vpop.f32.mrf.mxu0
      %v691 = vpop.f32.mrf.mxu0
      %v692 = vadd.f32 %v580, %v691
      %v693 = vpop.f32.mrf.mxu0
      %694 = vmatprep.mubr.bf16.mxu0 0
      %695 = vmatmul.mubr.bf16.gmra.mxu0 %v546
      %v696 = vpop.f32.mrf.mxu0
      %v697 = vadd.f32 %v580, %v696
      %v698 = vpop.f32.mrf.mxu0
      %v699 = vpop.f32.mrf.mxu0
      %v700 = vadd.f32 %v580, %v699
      %v701 = vpop.f32.mrf.mxu0
      %702 = vmatprep.mubr.bf16.mxu0 0
      %703 = vmatmul.mubr.bf16.gmra.mxu0 %v547
      %v704 = vpop.f32.mrf.mxu0
      %v705 = vadd.f32 %v580, %v704
      %v706 = vpop.f32.mrf.mxu0
      %v707 = vpop.f32.mrf.mxu0
      %v708 = vadd.f32 %v580, %v707
      %v709 = vpop.f32.mrf.mxu0
      %710 = vmatprep.mubr.bf16.mxu0 0
      %711 = vmatmul.mubr.bf16.gmra.mxu0 %v548
      %v712 = vpop.f32.mrf.mxu0
      %v713 = vadd.f32 %v580, %v712
      %v714 = vpop.f32.mrf.mxu0
      %v715 = vpop.f32.mrf.mxu0
      %v716 = vadd.f32 %v580, %v715
      %v717 = vpop.f32.mrf.mxu0
      %718 = vmatprep.mubr.bf16.mxu0 0
      %719 = vmatmul.mubr.bf16.gmra.mxu0 %v549
      %v720 = vpop.f32.mrf.mxu0
      %v721 = vadd.f32 %v580, %v720
      %v722 = vpop.f32.mrf.mxu0
      %v723 = vpop.f32.mrf.mxu0
      %v724 = vadd.f32 %v580, %v723
      %v725 = vpop.f32.mrf.mxu0
      %726 = vmatprep.mubr.bf16.mxu0 0
      %727 = vmatmul.mubr.bf16.gmra.mxu0 %v550
      %v728 = vpop.f32.mrf.mxu0
      %v729 = vadd.f32 %v580, %v728
      %v730 = vpop.f32.mrf.mxu0
      %v731 = vpop.f32.mrf.mxu0
      %v732 = vadd.f32 %v580, %v731
      %v733 = vpop.f32.mrf.mxu0
      %734 = vmatprep.mubr.bf16.mxu0 0
      %735 = vmatmul.mubr.bf16.gmra.mxu0 %v551
      %v736 = vpop.f32.mrf.mxu0
      %v737 = vadd.f32 %v580, %v736
      %v738 = vpop.f32.mrf.mxu0
      %v739 = vpop.f32.mrf.mxu0
      %v740 = vadd.f32 %v580, %v739
      %v741 = vpop.f32.mrf.mxu0
      %742 = vmatprep.mubr.bf16.mxu0 0
      %743 = vmatmul.mubr.bf16.gmra.mxu0 %v552
      %v744 = vpop.f32.mrf.mxu0
      %v745 = vadd.f32 %v580, %v744
      %v746 = vpop.f32.mrf.mxu0
      %v747 = vpop.f32.mrf.mxu0
      %v748 = vadd.f32 %v580, %v747
      %v749 = vpop.f32.mrf.mxu0
      %750 = vmatprep.mubr.bf16.mxu0 0
      %751 = vmatmul.mubr.bf16.gmra.mxu0 %v553
      %v752 = vpop.f32.mrf.mxu0
      %v753 = vadd.f32 %v580, %v752
      %v754 = vpop.f32.mrf.mxu0
      %v755 = vpop.f32.mrf.mxu0
      %v756 = vadd.f32 %v580, %v755
      %v757 = vpop.f32.mrf.mxu0
      %758 = vmatprep.mubr.bf16.mxu0 0
      %759 = vmatmul.mubr.bf16.gmra.mxu0 %v554
      %v760 = vpop.f32.mrf.mxu0
      %v761 = vadd.f32 %v580, %v760
      %v762 = vpop.f32.mrf.mxu0
      %v763 = vpop.f32.mrf.mxu0
      %v764 = vadd.f32 %v580, %v763
      %v765 = vpop.f32.mrf.mxu0
      %766 = vmatprep.mubr.bf16.mxu0 0
      %767 = vmatmul.mubr.bf16.gmra.mxu0 %v555
      %v768 = vpop.f32.mrf.mxu0
      %v769 = vadd.f32 %v580, %v768
      %v770 = vpop.f32.mrf.mxu0
      %v771 = vpop.f32.mrf.mxu0
      %v772 = vadd.f32 %v580, %v771
      %v773 = vpop.f32.mrf.mxu0
      %774 = vmatprep.mubr.bf16.mxu0 0
      %775 = vmatmul.mubr.bf16.gmra.mxu0 %v556
      %v776 = vpop.f32.mrf.mxu0
      %v777 = vadd.f32 %v580, %v776
      %v778 = vpop.f32.mrf.mxu0
      %v779 = vpop.f32.mrf.mxu0
      %v780 = vadd.f32 %v580, %v779
      %v781 = vpop.f32.mrf.mxu0
      %782 = vmatprep.mubr.bf16.mxu0 0
      %783 = vmatmul.mubr.bf16.gmra.mxu0 %v557
      %v784 = vpop.f32.mrf.mxu0
      %v785 = vadd.f32 %v580, %v784
      %v786 = vpop.f32.mrf.mxu0
      %v787 = vpop.f32.mrf.mxu0
      %v788 = vadd.f32 %v580, %v787
      %v789 = vpop.f32.mrf.mxu0
      %790 = vdwg.mxu0
      %v791 = vmax.f32 %v665, 0.0
      %v792 = vmax.f32 %v668, 0.0
      %v793 = vmax.f32 %v673, 0.0
      %v794 = vmax.f32 %v676, 0.0
      %v795 = vmax.f32 %v681, 0.0
      %v796 = vmax.f32 %v684, 0.0
      %v797 = vmax.f32 %v689, 0.0
      %v798 = vmax.f32 %v692, 0.0
      %v799 = vmax.f32 %v697, 0.0
      %v800 = vmax.f32 %v700, 0.0
      %v801 = vmax.f32 %v705, 0.0
      %v802 = vmax.f32 %v708, 0.0
      %v803 = vmax.f32 %v713, 0.0
      %v804 = vmax.f32 %v716, 0.0
      %v805 = vmax.f32 %v721, 0.0
      %v806 = vmax.f32 %v724, 0.0
      %v807 = vmax.f32 %v729, 0.0
      %v808 = vmax.f32 %v732, 0.0
      %v809 = vmax.f32 %v737, 0.0
      %v810 = vmax.f32 %v740, 0.0
      %v811 = vmax.f32 %v745, 0.0
      %v812 = vmax.f32 %v748, 0.0
      %v813 = vmax.f32 %v753, 0.0
      %v814 = vmax.f32 %v756, 0.0
      %v815 = vmax.f32 %v761, 0.0
      %v816 = vmax.f32 %v764, 0.0
      %v817 = vmax.f32 %v769, 0.0
      %v818 = vmax.f32 %v772, 0.0
      %v819 = vmax.f32 %v777, 0.0
      %v820 = vmax.f32 %v780, 0.0
      %v821 = vmax.f32 %v785, 0.0
      %v822 = vmax.f32 %v788, 0.0
      %v823 = vpack.c.bf16 %v792, %v791
      %v824 = vpack.c.bf16 %v794, %v793
      %v825 = vpack.c.bf16 %v796, %v795
      %v826 = vpack.c.bf16 %v798, %v797
      %v827 = vpack.c.bf16 %v800, %v799
      %v828 = vpack.c.bf16 %v802, %v801
      %v829 = vpack.c.bf16 %v804, %v803
      %v830 = vpack.c.bf16 %v806, %v805
      %v831 = vpack.c.bf16 %v808, %v807
      %v832 = vpack.c.bf16 %v810, %v809
      %v833 = vpack.c.bf16 %v812, %v811
      %v834 = vpack.c.bf16 %v814, %v813
      %v835 = vpack.c.bf16 %v816, %v815
      %v836 = vpack.c.bf16 %v818, %v817
      %v837 = vpack.c.bf16 %v820, %v819
      %v838 = vpack.c.bf16 %v822, %v821
      %v839 = vld [vmem:[%s4] sm:$0xf]
      %v840 = vld [vmem:[%s4 + $0x4] sm:$0xf]
      %v841 = vld [vmem:[%s4 + $0x8] sm:$0xf]
      %v842 = vld [vmem:[%s4 + $0xc] sm:$0xf]
      %v843 = vld [vmem:[%s4 + $0x10] sm:$0xf]
      %v844 = vld [vmem:[%s4 + $0x14] sm:$0xf]
      %v845 = vld [vmem:[%s4 + $0x18] sm:$0xf]
      %v846 = vld [vmem:[%s4 + $0x1c] sm:$0xf]
      %v847 = vld [vmem:[%s4 + $0x20] sm:$0xf]
      %v848 = vld [vmem:[%s4 + $0x24] sm:$0xf]
      %v849 = vld [vmem:[%s4 + $0x28] sm:$0xf]
      %v850 = vld [vmem:[%s4 + $0x2c] sm:$0xf]
      %v851 = vld [vmem:[%s4 + $0x30] sm:$0xf]
      %v852 = vld [vmem:[%s4 + $0x34] sm:$0xf]
      %v853 = vld [vmem:[%s4 + $0x38] sm:$0xf]
      %v854 = vld [vmem:[%s4 + $0x3c] sm:$0xf]
      %s855 = scalar_lea.vmem %s1, 2
      %v856 = vld [vmem:[%s855] sm:$0x1]
      %v858 = vlaneseq
      %v859 = vshrl.u32 %v858, 7
      %v860 = vsub.s32 0, %v859
      %v861 = vrot.slane %v856, %v860
      %v879 = vunpack.c.l.b16 %v839
      %v880 = vunpack.c.l.b16 %v840
      %v881 = vunpack.c.l.b16 %v841
      %v882 = vunpack.c.l.b16 %v842
      %v883 = vunpack.c.l.b16 %v843
      %v884 = vunpack.c.l.b16 %v844
      %v885 = vunpack.c.l.b16 %v845
      %v886 = vunpack.c.l.b16 %v846
      %v887 = vunpack.c.l.b16 %v847
      %v888 = vunpack.c.l.b16 %v848
      %v889 = vunpack.c.l.b16 %v849
      %v890 = vunpack.c.l.b16 %v850
      %v891 = vunpack.c.l.b16 %v851
      %v892 = vunpack.c.l.b16 %v852
      %v893 = vunpack.c.l.b16 %v853
      %v894 = vunpack.c.l.b16 %v854
      %v895 = vpack.c.b16 %v880, %v879
      %v896 = vpack.c.b16 %v882, %v881
      %v897 = vpack.c.b16 %v884, %v883
      %v898 = vpack.c.b16 %v886, %v885
      %v899 = vpack.c.b16 %v888, %v887
      %v900 = vpack.c.b16 %v890, %v889
      %v901 = vpack.c.b16 %v892, %v891
      %v902 = vpack.c.b16 %v894, %v893
      %911 = vmatprep.subr.bf16.mxu0 0
      %912 = vmatpush1.bf16.msra.mxu0 %v902
      %913 = vmatprep.subr.bf16.mxu0 0
      %914 = vmatpush1.bf16.msra.mxu0 %v901
      %915 = vmatprep.subr.bf16.mxu0 0
      %916 = vmatpush1.bf16.msra.mxu0 %v900
      %917 = vmatprep.subr.bf16.mxu0 0
      %918 = vmatpush1.bf16.msra.mxu0 %v899
      %919 = vmatprep.subr.bf16.mxu0 0
      %920 = vmatpush1.bf16.msra.mxu0 %v898
      %921 = vmatprep.subr.bf16.mxu0 0
      %922 = vmatpush1.bf16.msra.mxu0 %v897
      %923 = vmatprep.subr.bf16.mxu0 0
      %924 = vmatpush1.bf16.msra.mxu0 %v896
      %925 = vmatprep.subr.bf16.mxu0 0
      %926 = vmatpush1.bf16.msra.mxu0 %v895
      %927 = vmatprep.subr.bf16.mxu0 0
      %928 = vmatpush2.bf16.msra.mxu0 0
      %929 = vmatprep.subr.bf16.mxu0 0
      %930 = vmatpush2.bf16.msra.mxu0 0
      %931 = vmatprep.subr.bf16.mxu0 0
      %932 = vmatpush2.bf16.msra.mxu0 0
      %933 = vmatprep.subr.bf16.mxu0 0
      %934 = vmatpush2.bf16.msra.mxu0 0
      %935 = vmatprep.subr.bf16.mxu0 0
      %936 = vmatpush2.bf16.msra.mxu0 0
      %937 = vmatprep.subr.bf16.mxu0 0
      %938 = vmatpush2.bf16.msra.mxu0 0
      %939 = vmatprep.subr.bf16.mxu0 0
      %940 = vmatpush2.bf16.msra.mxu0 0
      %941 = vmatprep.subr.bf16.mxu0 0
      %942 = vmatpush2.bf16.msra.mxu0 0
      %943 = vmatprep.mubr.bf16.mxu0 0
      %944 = vmatmul.mubr.bf16.gmra.mxu0 %v823
      %v945 = vpop.f32.mrf.mxu0
      %v946 = vadd.f32 %v861, %v945
      %v947 = vpop.f32.mrf.mxu0
      %v948 = vpop.f32.mrf.mxu0
      %v949 = vadd.f32 %v861, %v948
      %v950 = vpop.f32.mrf.mxu0
      %951 = vmatprep.mubr.bf16.mxu0 0
      %952 = vmatmul.mubr.bf16.gmra.mxu0 %v824
      %v953 = vpop.f32.mrf.mxu0
      %v954 = vadd.f32 %v861, %v953
      %v955 = vpop.f32.mrf.mxu0
      %v956 = vpop.f32.mrf.mxu0
      %v957 = vadd.f32 %v861, %v956
      %v958 = vpop.f32.mrf.mxu0
      %959 = vmatprep.mubr.bf16.mxu0 0
      %960 = vmatmul.mubr.bf16.gmra.mxu0 %v825
      %v961 = vpop.f32.mrf.mxu0
      %v962 = vadd.f32 %v861, %v961
      %v963 = vpop.f32.mrf.mxu0
      %v964 = vpop.f32.mrf.mxu0
      %v965 = vadd.f32 %v861, %v964
      %v966 = vpop.f32.mrf.mxu0
      %967 = vmatprep.mubr.bf16.mxu0 0
      %968 = vmatmul.mubr.bf16.gmra.mxu0 %v826
      %v969 = vpop.f32.mrf.mxu0
      %v970 = vadd.f32 %v861, %v969
      %v971 = vpop.f32.mrf.mxu0
      %v972 = vpop.f32.mrf.mxu0
      %v973 = vadd.f32 %v861, %v972
      %v974 = vpop.f32.mrf.mxu0
      %975 = vmatprep.mubr.bf16.mxu0 0
      %976 = vmatmul.mubr.bf16.gmra.mxu0 %v827
      %v977 = vpop.f32.mrf.mxu0
      %v978 = vadd.f32 %v861, %v977
      %v979 = vpop.f32.mrf.mxu0
      %v980 = vpop.f32.mrf.mxu0
      %v981 = vadd.f32 %v861, %v980
      %v982 = vpop.f32.mrf.mxu0
      %983 = vmatprep.mubr.bf16.mxu0 0
      %984 = vmatmul.mubr.bf16.gmra.mxu0 %v828
      %v985 = vpop.f32.mrf.mxu0
      %v986 = vadd.f32 %v861, %v985
      %v987 = vpop.f32.mrf.mxu0
      %v988 = vpop.f32.mrf.mxu0
      %v989 = vadd.f32 %v861, %v988
      %v990 = vpop.f32.mrf.mxu0
      %991 = vmatprep.mubr.bf16.mxu0 0
      %992 = vmatmul.mubr.bf16.gmra.mxu0 %v829
      %v993 = vpop.f32.mrf.mxu0
      %v994 = vadd.f32 %v861, %v993
      %v995 = vpop.f32.mrf.mxu0
      %v996 = vpop.f32.mrf.mxu0
      %v997 = vadd.f32 %v861, %v996
      %v998 = vpop.f32.mrf.mxu0
      %999 = vmatprep.mubr.bf16.mxu0 0
      %1000 = vmatmul.mubr.bf16.gmra.mxu0 %v830
      %v1001 = vpop.f32.mrf.mxu0
      %v1002 = vadd.f32 %v861, %v1001
      %v1003 = vpop.f32.mrf.mxu0
      %v1004 = vpop.f32.mrf.mxu0
      %v1005 = vadd.f32 %v861, %v1004
      %v1006 = vpop.f32.mrf.mxu0
      %1007 = vmatprep.mubr.bf16.mxu0 0
      %1008 = vmatmul.mubr.bf16.gmra.mxu0 %v831
      %v1009 = vpop.f32.mrf.mxu0
      %v1010 = vadd.f32 %v861, %v1009
      %v1011 = vpop.f32.mrf.mxu0
      %v1012 = vpop.f32.mrf.mxu0
      %v1013 = vadd.f32 %v861, %v1012
      %v1014 = vpop.f32.mrf.mxu0
      %1015 = vmatprep.mubr.bf16.mxu0 0
      %1016 = vmatmul.mubr.bf16.gmra.mxu0 %v832
      %v1017 = vpop.f32.mrf.mxu0
      %v1018 = vadd.f32 %v861, %v1017
      %v1019 = vpop.f32.mrf.mxu0
      %v1020 = vpop.f32.mrf.mxu0
      %v1021 = vadd.f32 %v861, %v1020
      %v1022 = vpop.f32.mrf.mxu0
      %1023 = vmatprep.mubr.bf16.mxu0 0
      %1024 = vmatmul.mubr.bf16.gmra.mxu0 %v833
      %v1025 = vpop.f32.mrf.mxu0
      %v1026 = vadd.f32 %v861, %v1025
      %v1027 = vpop.f32.mrf.mxu0
      %v1028 = vpop.f32.mrf.mxu0
      %v1029 = vadd.f32 %v861, %v1028
      %v1030 = vpop.f32.mrf.mxu0
      %1031 = vmatprep.mubr.bf16.mxu0 0
      %1032 = vmatmul.mubr.bf16.gmra.mxu0 %v834
      %v1033 = vpop.f32.mrf.mxu0
      %v1034 = vadd.f32 %v861, %v1033
      %v1035 = vpop.f32.mrf.mxu0
      %v1036 = vpop.f32.mrf.mxu0
      %v1037 = vadd.f32 %v861, %v1036
      %v1038 = vpop.f32.mrf.mxu0
      %1039 = vmatprep.mubr.bf16.mxu0 0
      %1040 = vmatmul.mubr.bf16.gmra.mxu0 %v835
      %v1041 = vpop.f32.mrf.mxu0
      %v1042 = vadd.f32 %v861, %v1041
      %v1043 = vpop.f32.mrf.mxu0
      %v1044 = vpop.f32.mrf.mxu0
      %v1045 = vadd.f32 %v861, %v1044
      %v1046 = vpop.f32.mrf.mxu0
      %1047 = vmatprep.mubr.bf16.mxu0 0
      %1048 = vmatmul.mubr.bf16.gmra.mxu0 %v836
      %v1049 = vpop.f32.mrf.mxu0
      %v1050 = vadd.f32 %v861, %v1049
      %v1051 = vpop.f32.mrf.mxu0
      %v1052 = vpop.f32.mrf.mxu0
      %v1053 = vadd.f32 %v861, %v1052
      %v1054 = vpop.f32.mrf.mxu0
      %1055 = vmatprep.mubr.bf16.mxu0 0
      %1056 = vmatmul.mubr.bf16.gmra.mxu0 %v837
      %v1057 = vpop.f32.mrf.mxu0
      %v1058 = vadd.f32 %v861, %v1057
      %v1059 = vpop.f32.mrf.mxu0
      %v1060 = vpop.f32.mrf.mxu0
      %v1061 = vadd.f32 %v861, %v1060
      %v1062 = vpop.f32.mrf.mxu0
      %1063 = vmatprep.mubr.bf16.mxu0 0
      %1064 = vmatmul.mubr.bf16.gmra.mxu0 %v838
      %v1065 = vpop.f32.mrf.mxu0
      %v1066 = vadd.f32 %v861, %v1065
      %v1067 = vpop.f32.mrf.mxu0
      %v1068 = vpop.f32.mrf.mxu0
      %v1069 = vadd.f32 %v861, %v1068
      %v1070 = vpop.f32.mrf.mxu0
      %1071 = vdwg.mxu0
      %v1072 = vsub.f32 0.0, %v946
      %v1073 = vsub.f32 0.0, %v949
      %v1074 = vsub.f32 0.0, %v954
      %v1075 = vsub.f32 0.0, %v957
      %v1076 = vsub.f32 0.0, %v962
      %v1077 = vsub.f32 0.0, %v965
      %v1078 = vsub.f32 0.0, %v970
      %v1079 = vsub.f32 0.0, %v973
      %v1080 = vsub.f32 0.0, %v978
      %v1081 = vsub.f32 0.0, %v981
      %v1082 = vsub.f32 0.0, %v986
      %v1083 = vsub.f32 0.0, %v989
      %v1084 = vsub.f32 0.0, %v994
      %v1085 = vsub.f32 0.0, %v997
      %v1086 = vsub.f32 0.0, %v1002
      %v1087 = vsub.f32 0.0, %v1005
      %v1088 = vsub.f32 0.0, %v1010
      %v1089 = vsub.f32 0.0, %v1013
      %v1090 = vsub.f32 0.0, %v1018
      %v1091 = vsub.f32 0.0, %v1021
      %v1092 = vsub.f32 0.0, %v1026
      %v1093 = vsub.f32 0.0, %v1029
      %v1094 = vsub.f32 0.0, %v1034
      %v1095 = vsub.f32 0.0, %v1037
      %v1096 = vsub.f32 0.0, %v1042
      %v1097 = vsub.f32 0.0, %v1045
      %v1098 = vsub.f32 0.0, %v1050
      %v1099 = vsub.f32 0.0, %v1053
      %v1100 = vsub.f32 0.0, %v1058
      %v1101 = vsub.f32 0.0, %v1061
      %v1102 = vsub.f32 0.0, %v1066
      %v1103 = vsub.f32 0.0, %v1069
      %v1104 = vmul.f32 %v1072, 1.442695
      %v1105 = vpow.pop %v1104
      %v1106 = vmul.f32 %v1073, 1.442695
      %v1107 = vpow.pop %v1106
      %v1108 = vmul.f32 %v1074, 1.442695
      %v1109 = vpow.pop %v1108
      %v1110 = vmul.f32 %v1075, 1.442695
      %v1111 = vpow.pop %v1110
      %v1112 = vmul.f32 %v1076, 1.442695
      %v1113 = vpow.pop %v1112
      %v1114 = vmul.f32 %v1077, 1.442695
      %v1115 = vpow.pop %v1114
      %v1116 = vmul.f32 %v1078, 1.442695
      %v1117 = vpow.pop %v1116
      %v1118 = vmul.f32 %v1079, 1.442695
      %v1119 = vpow.pop %v1118
      %v1120 = vmul.f32 %v1080, 1.442695
      %v1121 = vpow.pop %v1120
      %v1122 = vmul.f32 %v1081, 1.442695
      %v1123 = vpow.pop %v1122
      %v1124 = vmul.f32 %v1082, 1.442695
      %v1125 = vpow.pop %v1124
      %v1126 = vmul.f32 %v1083, 1.442695
      %v1127 = vpow.pop %v1126
      %v1128 = vmul.f32 %v1084, 1.442695
      %v1129 = vpow.pop %v1128
      %v1130 = vmul.f32 %v1085, 1.442695
      %v1131 = vpow.pop %v1130
      %v1132 = vmul.f32 %v1086, 1.442695
      %v1133 = vpow.pop %v1132
      %v1134 = vmul.f32 %v1087, 1.442695
      %v1135 = vpow.pop %v1134
      %v1136 = vmul.f32 %v1088, 1.442695
      %v1137 = vpow.pop %v1136
      %v1138 = vmul.f32 %v1089, 1.442695
      %v1139 = vpow.pop %v1138
      %v1140 = vmul.f32 %v1090, 1.442695
      %v1141 = vpow.pop %v1140
      %v1142 = vmul.f32 %v1091, 1.442695
      %v1143 = vpow.pop %v1142
      %v1144 = vmul.f32 %v1092, 1.442695
      %v1145 = vpow.pop %v1144
      %v1146 = vmul.f32 %v1093, 1.442695
      %v1147 = vpow.pop %v1146
      %v1148 = vmul.f32 %v1094, 1.442695
      %v1149 = vpow.pop %v1148
      %v1150 = vmul.f32 %v1095, 1.442695
      %v1151 = vpow.pop %v1150
      %v1152 = vmul.f32 %v1096, 1.442695
      %v1153 = vpow.pop %v1152
      %v1154 = vmul.f32 %v1097, 1.442695
      %v1155 = vpow.pop %v1154
      %v1156 = vmul.f32 %v1098, 1.442695
      %v1157 = vpow.pop %v1156
      %v1158 = vmul.f32 %v1099, 1.442695
      %v1159 = vpow.pop %v1158
      %v1160 = vmul.f32 %v1100, 1.442695
      %v1161 = vpow.pop %v1160
      %v1162 = vmul.f32 %v1101, 1.442695
      %v1163 = vpow.pop %v1162
      %v1164 = vmul.f32 %v1102, 1.442695
      %v1165 = vpow.pop %v1164
      %v1166 = vmul.f32 %v1103, 1.442695
      %v1167 = vpow.pop %v1166
      %v1168 = vadd.f32 %v1105, 1.0
      %v1169 = vadd.f32 %v1107, 1.0
      %v1170 = vadd.f32 %v1109, 1.0
      %v1171 = vadd.f32 %v1111, 1.0
      %v1172 = vadd.f32 %v1113, 1.0
      %v1173 = vadd.f32 %v1115, 1.0
      %v1174 = vadd.f32 %v1117, 1.0
      %v1175 = vadd.f32 %v1119, 1.0
      %v1176 = vadd.f32 %v1121, 1.0
      %v1177 = vadd.f32 %v1123, 1.0
      %v1178 = vadd.f32 %v1125, 1.0
      %v1179 = vadd.f32 %v1127, 1.0
      %v1180 = vadd.f32 %v1129, 1.0
      %v1181 = vadd.f32 %v1131, 1.0
      %v1182 = vadd.f32 %v1133, 1.0
      %v1183 = vadd.f32 %v1135, 1.0
      %v1184 = vadd.f32 %v1137, 1.0
      %v1185 = vadd.f32 %v1139, 1.0
      %v1186 = vadd.f32 %v1141, 1.0
      %v1187 = vadd.f32 %v1143, 1.0
      %v1188 = vadd.f32 %v1145, 1.0
      %v1189 = vadd.f32 %v1147, 1.0
      %v1190 = vadd.f32 %v1149, 1.0
      %v1191 = vadd.f32 %v1151, 1.0
      %v1192 = vadd.f32 %v1153, 1.0
      %v1193 = vadd.f32 %v1155, 1.0
      %v1194 = vadd.f32 %v1157, 1.0
      %v1195 = vadd.f32 %v1159, 1.0
      %v1196 = vadd.f32 %v1161, 1.0
      %v1197 = vadd.f32 %v1163, 1.0
      %v1198 = vadd.f32 %v1165, 1.0
      %v1199 = vadd.f32 %v1167, 1.0
      %v1200 = vrcp.pop %v1168
      %v1201 = vrcp.pop %v1169
      %v1202 = vrcp.pop %v1170
      %v1203 = vrcp.pop %v1171
      %v1204 = vrcp.pop %v1172
      %v1205 = vrcp.pop %v1173
      %v1206 = vrcp.pop %v1174
      %v1207 = vrcp.pop %v1175
      %v1208 = vrcp.pop %v1176
      %v1209 = vrcp.pop %v1177
      %v1210 = vrcp.pop %v1178
      %v1211 = vrcp.pop %v1179
      %v1212 = vrcp.pop %v1180
      %v1213 = vrcp.pop %v1181
      %v1214 = vrcp.pop %v1182
      %v1215 = vrcp.pop %v1183
      %v1216 = vrcp.pop %v1184
      %v1217 = vrcp.pop %v1185
      %v1218 = vrcp.pop %v1186
      %v1219 = vrcp.pop %v1187
      %v1220 = vrcp.pop %v1188
      %v1221 = vrcp.pop %v1189
      %v1222 = vrcp.pop %v1190
      %v1223 = vrcp.pop %v1191
      %v1224 = vrcp.pop %v1192
      %v1225 = vrcp.pop %v1193
      %v1226 = vrcp.pop %v1194
      %v1227 = vrcp.pop %v1195
      %v1228 = vrcp.pop %v1196
      %v1229 = vrcp.pop %v1197
      %v1230 = vrcp.pop %v1198
      %v1231 = vrcp.pop %v1199
      %vm1232 = vcmask 130048
      %1233 = vst.msk [vmem:[%s226] sm:$0xff] %vm1232, %v1200
      %1234 = vst.msk [vmem:[%s226 + $0x8] sm:$0xff] %vm1232, %v1201
      %1235 = vst.msk [vmem:[%s226 + $0x10] sm:$0xff] %vm1232, %v1202
      %1236 = vst.msk [vmem:[%s226 + $0x18] sm:$0xff] %vm1232, %v1203
      %1237 = vst.msk [vmem:[%s226 + $0x20] sm:$0xff] %vm1232, %v1204
      %1238 = vst.msk [vmem:[%s226 + $0x28] sm:$0xff] %vm1232, %v1205
      %1239 = vst.msk [vmem:[%s226 + $0x30] sm:$0xff] %vm1232, %v1206
      %1240 = vst.msk [vmem:[%s226 + $0x38] sm:$0xff] %vm1232, %v1207
      %1241 = vst.msk [vmem:[%s226 + $0x40] sm:$0xff] %vm1232, %v1208
      %1242 = vst.msk [vmem:[%s226 + $0x48] sm:$0xff] %vm1232, %v1209
      %1243 = vst.msk [vmem:[%s226 + $0x50] sm:$0xff] %vm1232, %v1210
      %1244 = vst.msk [vmem:[%s226 + $0x58] sm:$0xff] %vm1232, %v1211
      %1245 = vst.msk [vmem:[%s226 + $0x60] sm:$0xff] %vm1232, %v1212
      %1246 = vst.msk [vmem:[%s226 + $0x68] sm:$0xff] %vm1232, %v1213
      %1247 = vst.msk [vmem:[%s226 + $0x70] sm:$0xff] %vm1232, %v1214
      %1248 = vst.msk [vmem:[%s226 + $0x78] sm:$0xff] %vm1232, %v1215
      %1249 = vst.msk [vmem:[%s226 + $0x80] sm:$0xff] %vm1232, %v1216
      %1250 = vst.msk [vmem:[%s226 + $0x88] sm:$0xff] %vm1232, %v1217
      %1251 = vst.msk [vmem:[%s226 + $0x90] sm:$0xff] %vm1232, %v1218
      %1252 = vst.msk [vmem:[%s226 + $0x98] sm:$0xff] %vm1232, %v1219
      %1253 = vst.msk [vmem:[%s226 + $0xa0] sm:$0xff] %vm1232, %v1220
      %1254 = vst.msk [vmem:[%s226 + $0xa8] sm:$0xff] %vm1232, %v1221
      %1255 = vst.msk [vmem:[%s226 + $0xb0] sm:$0xff] %vm1232, %v1222
      %1256 = vst.msk [vmem:[%s226 + $0xb8] sm:$0xff] %vm1232, %v1223
      %1257 = vst.msk [vmem:[%s226 + $0xc0] sm:$0xff] %vm1232, %v1224
      %1258 = vst.msk [vmem:[%s226 + $0xc8] sm:$0xff] %vm1232, %v1225
      %1259 = vst.msk [vmem:[%s226 + $0xd0] sm:$0xff] %vm1232, %v1226
      %1260 = vst.msk [vmem:[%s226 + $0xd8] sm:$0xff] %vm1232, %v1227
      %1261 = vst.msk [vmem:[%s226 + $0xe0] sm:$0xff] %vm1232, %v1228
      %1262 = vst.msk [vmem:[%s226 + $0xe8] sm:$0xff] %vm1232, %v1229
      %1263 = vst.msk [vmem:[%s226 + $0xf0] sm:$0xff] %vm1232, %v1230
      %1264 = vst.msk [vmem:[%s226 + $0xf8] sm:$0xff] %vm1232, %v1231
      %s1265 = smul.u32 32, %s16
      %p1266 = scmp.lt.s32.totalorder %s1265, 63
      %s1267 = scalar_select %p1266, %s1265, 63
      %s1268 = smul.addr %s1267, 8
      %s1269 = scalar_lea.vmem %s5, %s1268
      // Predicated region
      $region41: #{tpu_custom_call.1} parent=39 // pred_check
        %p1270 = pneg %p144
      $region42: #{tpu_custom_call.1} parent=39 // pred_check_branch
        %1272 = sbr.rel (%p1270) target = $region44
      $region43: #{tpu_custom_call.1} parent=39 // pred_region
        %s1273 = smul.u32 32, %s16
      $region44: #{tpu_custom_call.1} parent=39 // pred_fallthru
        _
    $region40: #{tpu_custom_call.1} parent=5 // pred_fallthru
      _
    %p1274 = scmp.le.s32.totalorder 2, %s11
    // Predicated region
    $region45: #{tpu_custom_call.1} parent=5 // pred_check
      %p1275 = pneg %p1274
    $region46: #{tpu_custom_call.1} parent=5 // pred_check_branch
      %1277 = sbr.rel (%p1275) target = $region48
    $region47: #{tpu_custom_call.1} parent=5 // pred_region
      %s1278 = ssub.s32 %s11, 2
      // Predicated region
      $region49: #{tpu_custom_call.1} parent=47 // pred_check
        %p1279 = pneg %p150
      $region50: #{tpu_custom_call.1} parent=47 // pred_check_branch
        %1281 = sbr.rel (%p1279) target = $region52
      $region51: #{tpu_custom_call.1} parent=47 // pred_region
        %s1282 = smul.u32 32, %s17
        %p1283 = scmp.lt.s32.totalorder %s1282, 63
        %s1284 = scalar_select %p1283, %s1282, 63
        %s1285 = smul.addr %s1284, 8
        %s1286 = scalar_lea.vmem %s5, %s1285
      $region52: #{tpu_custom_call.1} parent=47 // pred_fallthru
        _
    $region48: #{tpu_custom_call.1} parent=5 // pred_fallthru
      _
  $region6: #{tpu_custom_call.1} parent=0 // loop_footer
    %s15 = sadd.s32 1, %s11
  $region7: #{tpu_custom_call.1} parent=0 // loop_footer_branch
    %10 = sbr.rel target = $region3
  $region8: #{tpu_custom_call.1} parent=0 // loop_exit
    _

</llo_original>
